<compile_context>
chip_gen: v5e
topology: v5e:2x2
jax: 0.10.0
libtpu: 0.0.40
codegen_flags: <defaults>
</compile_context>

<pallas_src>
import functools

import numpy as np

import jax
import jax.numpy as jnp
from jax import lax
from jax.experimental import pallas as pl
from jax.experimental.pallas import tpu as pltpu


def _round_up(x, m):
    return ((x + m - 1) // m) * m


def _cdiv(a, b):
    return -(-a // b)


def _focal_ce_kernel(x_ref, t_ref, out_ref, acc_ref, *,
                     class_weights, gamma, alpha, n_valid):
    p = pl.program_id(0)
    s = pl.program_id(1)
    n_steps = pl.num_programs(1)

    @pl.when(s == 0)
    def _():
        acc_ref[...] = jnp.zeros_like(acc_ref)

    num_classes = x_ref.shape[0]
    tr = t_ref.shape[0]

    t = t_ref[...]                                             # (tr, 128) int32 targets
    xs = [x_ref[c].astype(jnp.float32) for c in range(num_classes)]  # C x (tr, 128)

    # Stable logsumexp over the (tiny) class dim: unrolled elementwise max / exp-add.
    m = xs[0]
    for c in range(1, num_classes):
        m = jnp.maximum(m, xs[c])

    sum_exp = jnp.zeros_like(m)
    logit_t = jnp.zeros_like(m)
    w_t = jnp.zeros_like(m)
    for c in range(num_classes):
        sum_exp = sum_exp + jnp.exp(xs[c] - m)
        is_c = t == c
        logit_t = jnp.where(is_c, xs[c], logit_t)
        w_t = jnp.where(is_c, jnp.float32(class_weights[c]), w_t)

    lse = m + jnp.log(sum_exp)
    ce = w_t * (lse - logit_t)
    pt = jnp.exp(-ce)
    one_m_pt = jnp.maximum(1.0 - pt, 0.0)        # guard tiny negative rounding

    # (1 - pt)^gamma: explicit VPU multiplies for integer gamma (default 2.0).
    if float(gamma).is_integer() and gamma >= 0:
        mod = jnp.ones_like(one_m_pt)
        for _ in range(int(gamma)):
            mod = mod * one_m_pt
    else:
        mod = one_m_pt ** jnp.float32(gamma)

    focal = jnp.float32(alpha) * mod * ce        # (tr, 128)

    # Mask samples past the true N (covers layout padding and ragged last blocks;
    # jnp.where also kills any NaN/Inf arising from undefined out-of-bounds data).
    base = (p * n_steps + s) * tr
    row = lax.broadcasted_iota(jnp.int32, focal.shape, 0)
    col = lax.broadcasted_iota(jnp.int32, focal.shape, 1)
    sample_idx = (base + row) * 128 + col
    focal = jnp.where(sample_idx < n_valid, focal, 0.0)

    # Lane-dense accumulation; the only cross-lane reduce is at finalize.
    acc_ref[...] += focal

    @pl.when(s == n_steps - 1)
    def _():
        total = jnp.sum(acc_ref[...]).reshape(1, 1)
        out_ref[...] = jnp.broadcast_to(total, out_ref.shape)


def weighted_focal_cross_entropy_loss(inputs, targets, class_weights=None,
                                      gamma=2.0, alpha=0.25, *,
                                      block_rows=2048, num_partials=1):
    """inputs: (N, C) float logits; targets: (N,) int; class_weights: concrete (C,) values.

    class_weights/gamma/alpha are module-init constants (as in the PyTorch module) and are
    baked into the kernel as compile-time constants.
    """
    n, c = inputs.shape
    if class_weights is None:
        class_weights = (100.0, 1.0, 100.0)
    cw = tuple(float(v) for v in np.ravel(np.asarray(jax.device_get(class_weights))))
    assert len(cw) == c, "class_weights length must equal the number of classes"

    itemsize = jnp.dtype(inputs.dtype).itemsize
    num_partials = max(1, int(num_partials))

    # Samples-in-lanes layout: (N, C) -> (C, NR, 128) with NR a multiple of 8 sublanes.
    nr = _cdiv(max(n, 1), 128)
    nr_pad = _round_up(nr, 8)
    n128 = nr_pad * 128            # <= 1023 samples of layout padding, masked in-kernel

    # Row-tile sizing: biggest block whose double-buffered logits+targets fit the budget.
    bytes_per_row = 128 * (c * itemsize + 4)      # logits + int32 target per 128 samples
    vmem_budget = 16 << 20                        # for double-buffered input blocks
    tr_cap = max(8, (vmem_budget // (2 * bytes_per_row)) // 8 * 8)
    # TODO(synk): for vocab-sized C (where even tr=8 blows VMEM) add a (tm, C) path that
    # tiles over C with an online logsumexp instead of the samples-in-lanes layout.
    tr = min(int(block_rows), tr_cap)
    tr = max(8, min(tr, _round_up(_cdiv(nr_pad, num_partials), 8)))
    tr = _round_up(tr, 8)

    steps_per_core = _cdiv(nr_pad, num_partials * tr)
    max_blk = _cdiv(nr_pad, tr) - 1               # last valid row-block index

    # Layout plumbing only: transpose + tiny pad + free reshape (no O(N) padding pass).
    x_t = jnp.pad(jnp.transpose(inputs), ((0, 0), (0, n128 - n)))
    x_3d = x_t.reshape(c, nr_pad, 128)
    t_2d = jnp.pad(targets.astype(jnp.int32), (0, n128 - n)).reshape(nr_pad, 128)

    kernel = functools.partial(_focal_ce_kernel, class_weights=cw,
                               gamma=float(gamma), alpha=float(alpha), n_valid=n)

    def x_map(p, s):
        return (0, jnp.minimum(p * steps_per_core + s, max_blk), 0)

    def t_map(p, s):
        return (jnp.minimum(p * steps_per_core + s, max_blk), 0)

    x_block_bytes = c * tr * 128 * itemsize
    t_block_bytes = tr * 128 * 4
    acc_bytes = tr * 128 * 4
    working = 2 * (x_block_bytes + t_block_bytes) + acc_bytes
    vmem_limit = int(min(48 << 20, working + (24 << 20)))   # headroom for compiler temps

    partials = pl.pallas_call(
        kernel,
        out_shape=jax.ShapeDtypeStruct((num_partials * 8, 128), jnp.float32),
        grid_spec=pltpu.PrefetchScalarGridSpec(
            num_scalar_prefetch=0,
            grid=(num_partials, steps_per_core),
            in_specs=[
                pl.BlockSpec((c, tr, 128), x_map),    # logits: classes on sublane-major axis
                pl.BlockSpec((tr, 128), t_map),       # targets: samples on lanes
            ],
            out_specs=pl.BlockSpec((8, 128), lambda p, s: (p, 0)),
            scratch_shapes=[pltpu.VMEM((tr, 128), jnp.float32)],
        ),
        compiler_params=pltpu.CompilerParams(
            dimension_semantics=("parallel", "arbitrary"),
            vmem_limit_bytes=vmem_limit),
    )(x_3d, t_2d)

    per_core = partials.reshape(num_partials, 8, 128)[:, 0, 0]
    return jnp.sum(per_core) / jnp.float32(n)


def _reference_loss(inputs, targets, class_weights, gamma=2.0, alpha=0.25):
    x = inputs.astype(jnp.float32)
    lse = jax.scipy.special.logsumexp(x, axis=-1)
    logit_t = jnp.take_along_axis(x, targets[:, None].astype(jnp.int32), axis=-1)[:, 0]
    w_t = jnp.asarray(class_weights, jnp.float32)[targets.astype(jnp.int32)]
    ce = w_t * (lse - logit_t)
    pt = jnp.exp(-ce)
    return jnp.mean(alpha * (1.0 - pt) ** gamma * ce)


if __name__ == "__main__":
    key = jax.random.PRNGKey(0)
    k1, k2, k3, k4 = jax.random.split(key, 4)

    # Module defaults: 3 classes, weights [100, 1, 100], gamma=2.0, alpha=0.25.
    N, C = 8, 3
    class_weights = jnp.array([100.0, 1.0, 100.0], dtype=jnp.float32)
    inputs = jax.random.normal(k1, (N, C), dtype=jnp.float32)
    targets = jax.random.randint(k2, (N,), 0, C, dtype=jnp.int32)

    loss = jax.block_until_ready(
        weighted_focal_cross_entropy_loss(inputs, targets, class_weights))
    ref = _reference_loss(inputs, targets, class_weights)
    assert jnp.allclose(loss, ref, rtol=1e-5, atol=1e-5), (loss, ref)

    # Larger case: bf16 logits, multi-step grid (small block_rows), masked ragged tail.
    N2 = 4000
    inputs2 = jax.random.normal(k3, (N2, C), dtype=jnp.float32).astype(jnp.bfloat16)
    targets2 = jax.random.randint(k4, (N2,), 0, C, dtype=jnp.int32)
    loss2 = jax.block_until_ready(
        weighted_focal_cross_entropy_loss(inputs2, targets2, class_weights, block_rows=8))
    ref2 = _reference_loss(inputs2, targets2, class_weights)
    assert jnp.allclose(loss2, ref2, rtol=1e-4, atol=1e-4), (loss2, ref2)

    print("KERNEL_OK")
</pallas_src>

<mosaic_0001>
module attributes {stable_mosaic.version = 11 : i64} {
  func.func @_focal_ce_kernel(%arg0: i32, %arg1: i32, %arg2: memref<3x8x128xf32, #tpu.memory_space<vmem>>, %arg3: memref<8x128xi32, #tpu.memory_space<vmem>>, %arg4: memref<8x128xf32, #tpu.memory_space<vmem>>, %arg5: memref<8x128xf32, #tpu.memory_space<vmem>>) attributes {dimension_semantics = [#tpu.dimension_semantics<parallel>, #tpu.dimension_semantics<arbitrary>], iteration_bounds = array<i64: 1, 1>, scalar_prefetch = 0 : i64, scratch_operands = 1 : i64, tpu.core_type = #tpu.core_type<tc>, window_params = [{transform_indices = @transform_0, window_bounds = array<i64: 3, 8, 128>}, {transform_indices = @transform_1, window_bounds = array<i64: 8, 128>}, {transform_indices = @transform_2, window_bounds = array<i64: 8, 128>}]} {
    %c0_i32 = arith.constant 0 : i32
    %0 = arith.cmpi eq, %arg1, %c0_i32 : i32
    %1 = arith.extui %0 : i1 to i32
    %c0_i32_0 = arith.constant 0 : i32
    %2 = arith.cmpi ne, %1, %c0_i32_0 : i32
    scf.if %2 {
      %cst_29 = arith.constant 0.000000e+00 : f32
      %76 = vector.broadcast %cst_29 : f32 to vector<8x128xf32>
      %c0_30 = arith.constant 0 : index
      %c0_31 = arith.constant 0 : index
      %77 = vector.load %arg5[%c0_30, %c0_31] : memref<8x128xf32, #tpu.memory_space<vmem>>, vector<8x128xf32>
      tpu.vector_store %arg5[%c0_30, %c0_31], %76 {strides = array<i32>} : memref<8x128xf32, #tpu.memory_space<vmem>>, vector<8x128xf32>,
    } else {
    }
    %c0 = arith.constant 0 : index
    %c0_1 = arith.constant 0 : index
    %3 = vector.load %arg3[%c0, %c0_1] : memref<8x128xi32, #tpu.memory_space<vmem>>, vector<8x128xi32>
    %c0_2 = arith.constant 0 : index
    %c0_3 = arith.constant 0 : index
    %c0_4 = arith.constant 0 : index
    %4 = vector.load %arg2[%c0_2, %c0_3, %c0_4] : memref<3x8x128xf32, #tpu.memory_space<vmem>>, vector<1x8x128xf32>
    %5 = vector.shape_cast %4 : vector<1x8x128xf32> to vector<8x128xf32>
    %c1 = arith.constant 1 : index
    %c0_5 = arith.constant 0 : index
    %c0_6 = arith.constant 0 : index
    %6 = vector.load %arg2[%c1, %c0_5, %c0_6] : memref<3x8x128xf32, #tpu.memory_space<vmem>>, vector<1x8x128xf32>
    %7 = vector.shape_cast %6 : vector<1x8x128xf32> to vector<8x128xf32>
    %c2 = arith.constant 2 : index
    %c0_7 = arith.constant 0 : index
    %c0_8 = arith.constant 0 : index
    %8 = vector.load %arg2[%c2, %c0_7, %c0_8] : memref<3x8x128xf32, #tpu.memory_space<vmem>>, vector<1x8x128xf32>
    %9 = vector.shape_cast %8 : vector<1x8x128xf32> to vector<8x128xf32>
    %10 = arith.maximumf %5, %7 : vector<8x128xf32>
    %11 = arith.maximumf %10, %9 : vector<8x128xf32>
    %cst = arith.constant 0.000000e+00 : f32
    %12 = vector.broadcast %cst : f32 to vector<8x128xf32>
    %cst_9 = arith.constant 0.000000e+00 : f32
    %13 = vector.broadcast %cst_9 : f32 to vector<8x128xf32>
    %cst_10 = arith.constant 0.000000e+00 : f32
    %14 = vector.broadcast %cst_10 : f32 to vector<8x128xf32>
    %15 = arith.subf %5, %11 : vector<8x128xf32>
    %16 = math.exp %15 : vector<8x128xf32>
    %17 = arith.addf %12, %16 : vector<8x128xf32>
    %c0_i32_11 = arith.constant 0 : i32
    %18 = vector.broadcast %c0_i32_11 : i32 to vector<8x128xi32>
    %19 = arith.cmpi eq, %3, %18 : vector<8x128xi32>
    %20 = arith.select %19, %5, %13 : vector<8x128xi1>, vector<8x128xf32>
    %cst_12 = arith.constant 1.000000e+02 : f32
    %21 = vector.broadcast %cst_12 : f32 to vector<8x128xf32>
    %22 = arith.select %19, %21, %14 : vector<8x128xi1>, vector<8x128xf32>
    %23 = arith.subf %7, %11 : vector<8x128xf32>
    %24 = math.exp %23 : vector<8x128xf32>
    %25 = arith.addf %17, %24 : vector<8x128xf32>
    %c1_i32 = arith.constant 1 : i32
    %26 = vector.broadcast %c1_i32 : i32 to vector<8x128xi32>
    %27 = arith.cmpi eq, %3, %26 : vector<8x128xi32>
    %28 = arith.select %27, %7, %20 : vector<8x128xi1>, vector<8x128xf32>
    %cst_13 = arith.constant 1.000000e+00 : f32
    %29 = vector.broadcast %cst_13 : f32 to vector<8x128xf32>
    %30 = arith.select %27, %29, %22 : vector<8x128xi1>, vector<8x128xf32>
    %31 = arith.subf %9, %11 : vector<8x128xf32>
    %32 = math.exp %31 : vector<8x128xf32>
    %33 = arith.addf %25, %32 : vector<8x128xf32>
    %c2_i32 = arith.constant 2 : i32
    %34 = vector.broadcast %c2_i32 : i32 to vector<8x128xi32>
    %35 = arith.cmpi eq, %3, %34 : vector<8x128xi32>
    %36 = arith.select %35, %9, %28 : vector<8x128xi1>, vector<8x128xf32>
    %cst_14 = arith.constant 1.000000e+02 : f32
    %37 = vector.broadcast %cst_14 : f32 to vector<8x128xf32>
    %38 = arith.select %35, %37, %30 : vector<8x128xi1>, vector<8x128xf32>
    %39 = math.log %33 : vector<8x128xf32>
    %40 = arith.addf %11, %39 : vector<8x128xf32>
    %41 = arith.subf %40, %36 : vector<8x128xf32>
    %42 = arith.mulf %38, %41 : vector<8x128xf32>
    %cst_15 = arith.constant 0.000000e+00 : f32
    %43 = vector.broadcast %cst_15 : f32 to vector<8x128xf32>
    %44 = arith.subf %43, %42 : vector<8x128xf32>
    %45 = math.exp %44 : vector<8x128xf32>
    %cst_16 = arith.constant 1.000000e+00 : f32
    %46 = vector.broadcast %cst_16 : f32 to vector<8x128xf32>
    %47 = arith.subf %46, %45 : vector<8x128xf32>
    %cst_17 = arith.constant 0.000000e+00 : f32
    %48 = vector.broadcast %cst_17 : f32 to vector<8x128xf32>
    %49 = arith.maximumf %47, %48 : vector<8x128xf32>
    %cst_18 = arith.constant 1.000000e+00 : f32
    %50 = vector.broadcast %cst_18 : f32 to vector<8x128xf32>
    %51 = arith.mulf %50, %49 : vector<8x128xf32>
    %52 = arith.mulf %51, %49 : vector<8x128xf32>
    %cst_19 = arith.constant 2.500000e-01 : f32
    %53 = vector.broadcast %cst_19 : f32 to vector<8x128xf32>
    %54 = arith.mulf %53, %52 : vector<8x128xf32>
    %55 = arith.mulf %54, %42 : vector<8x128xf32>
    %c1_i32_20 = arith.constant 1 : i32
    %56 = arith.muli %arg0, %c1_i32_20 : i32
    %57 = arith.addi %56, %arg1 : i32
    %c8_i32 = arith.constant 8 : i32
    %58 = arith.muli %57, %c8_i32 : i32
    %59 = tpu.iota {dimensions = array<i32: 0>} : vector<8x128xi32>
    %60 = tpu.iota {dimensions = array<i32: 1>} : vector<8x128xi32>
    %61 = vector.broadcast %58 : i32 to vector<8x128xi32>
    %62 = arith.addi %61, %59 : vector<8x128xi32>
    %c128_i32 = arith.constant 128 : i32
    %63 = vector.broadcast %c128_i32 : i32 to vector<8x128xi32>
    %64 = arith.muli %62, %63 : vector<8x128xi32>
    %65 = arith.addi %64, %60 : vector<8x128xi32>
    %c8_i32_21 = arith.constant 8 : i32
    %66 = vector.broadcast %c8_i32_21 : i32 to vector<8x128xi32>
    %67 = arith.cmpi slt, %65, %66 : vector<8x128xi32>
    %cst_22 = arith.constant 0.000000e+00 : f32
    %68 = vector.broadcast %cst_22 : f32 to vector<8x128xf32>
    %69 = arith.select %67, %55, %68 : vector<8x128xi1>, vector<8x128xf32>
    %c0_23 = arith.constant 0 : index
    %c0_24 = arith.constant 0 : index
    %70 = vector.load %arg5[%c0_23, %c0_24] : memref<8x128xf32, #tpu.memory_space<vmem>>, vector<8x128xf32>
    %71 = arith.addf %70, %69 : vector<8x128xf32>
    %c0_25 = arith.constant 0 : index
    %c0_26 = arith.constant 0 : index
    %72 = vector.load %arg5[%c0_25, %c0_26] : memref<8x128xf32, #tpu.memory_space<vmem>>, vector<8x128xf32>
    tpu.vector_store %arg5[%c0_25, %c0_26], %71 {strides = array<i32>} : memref<8x128xf32, #tpu.memory_space<vmem>>, vector<8x128xf32>,
    %c0_i32_27 = arith.constant 0 : i32
    %73 = arith.cmpi eq, %arg1, %c0_i32_27 : i32
    %74 = arith.extui %73 : i1 to i32
    %c0_i32_28 = arith.constant 0 : i32
    %75 = arith.cmpi ne, %74, %c0_i32_28 : i32
    scf.if %75 {
      %c0_29 = arith.constant 0 : index
      %c0_30 = arith.constant 0 : index
      %76 = vector.load %arg5[%c0_29, %c0_30] : memref<8x128xf32, #tpu.memory_space<vmem>>, vector<8x128xf32>
      %77 = vector.shape_cast %76 : vector<8x128xf32> to vector<1x8x128xf32>
      %cst_31 = arith.constant dense<0.000000e+00> : vector<1xf32>
      %78 = vector.multi_reduction <add>, %77, %cst_31 [1, 2] : vector<1x8x128xf32> to vector<1xf32>
      %79 = vector.shape_cast %78 : vector<1xf32> to vector<1x1x1xf32>
      %80 = vector.extract %79[0, 0, 0] : f32 from vector<1x1x1xf32>
      %81 = vector.broadcast %80 : f32 to vector<1x1xf32>
      %82 = vector.shape_cast %81 : vector<1x1xf32> to vector<1x1xf32>
      %83 = vector.broadcast %82 : vector<1x1xf32> to vector<8x128xf32>
      %c0_32 = arith.constant 0 : index
      %c0_33 = arith.constant 0 : index
      %84 = vector.load %arg4[%c0_32, %c0_33] : memref<8x128xf32, #tpu.memory_space<vmem>>, vector<8x128xf32>
      tpu.vector_store %arg4[%c0_32, %c0_33], %83 {strides = array<i32>} : memref<8x128xf32, #tpu.memory_space<vmem>>, vector<8x128xf32>,
    } else {
    }
    return
  }
  func.func @transform_0(%arg0: i32, %arg1: i32) -> (i32, i32, i32) {
    %c1_i32 = arith.constant 1 : i32
    %0 = arith.muli %arg0, %c1_i32 : i32
    %1 = arith.addi %0, %arg1 : i32
    %c0_i32 = arith.constant 0 : i32
    %2 = arith.minsi %1, %c0_i32 : i32
    %c0_i32_0 = arith.constant 0 : i32
    %c0_i32_1 = arith.constant 0 : i32
    %c0_i32_2 = arith.constant 0 : i32
    return %c0_i32_0, %2, %c0_i32_1 : i32, i32, i32
  }
  func.func @transform_1(%arg0: i32, %arg1: i32) -> (i32, i32) {
    %c1_i32 = arith.constant 1 : i32
    %0 = arith.muli %arg0, %c1_i32 : i32
    %1 = arith.addi %0, %arg1 : i32
    %c0_i32 = arith.constant 0 : i32
    %2 = arith.minsi %1, %c0_i32 : i32
    %c0_i32_0 = arith.constant 0 : i32
    %c0_i32_1 = arith.constant 0 : i32
    return %2, %c0_i32_0 : i32, i32
  }
  func.func @transform_2(%arg0: i32, %arg1: i32) -> (i32, i32) {
    %c0_i32 = arith.constant 0 : i32
    %c0_i32_0 = arith.constant 0 : i32
    return %arg0, %c0_i32 : i32, i32
  }
}

</mosaic_0001>

<llo_original>
// kernel: tpu_custom_call.1
$region0: #{tpu_custom_call.1}
  #allocation0 [shape = 'u32[]', space=smem, size = 0x4, offset = 0x4, fixed_abs, tag = 'smem constant byte address 0x4 - core index']
  #allocation1 [shape = 'u32[72,128]{1,0:T(1,128)}', space=vmem, size = 0x9000, scoped, tag = 'internal scratch']
  #allocation2 [shape = 'f32[8,128]{1,0:T(8,128)}', space=vmem, size = 0x1000, scoped, tag = 'scratch operand']
  %s0 = inlined_call_operand.hbm [shape: f32[3,8,128], index: 0, kind: input, shape index: {}]
  %s1 = inlined_call_operand.hbm [shape: s32[8,128], index: 1, kind: input, shape index: {}]
  %s2 = inlined_call_operand.hbm [shape: f32[8,128], index: 2, kind: output, shape index: {}]
  %s3 = sld [smem:[#allocation0]]
  $region34: #{tpu_custom_call.1} parent=0
    _
  %s5 = ssub.s32 1, %s3
  %s6 = scalar_select 0, %s5, %s3
  $region1: #{tpu_custom_call.1} parent=0
    #allocation3 [shape = 'u8[12288]{0}', space=vmem, size = 0x3000, scoped, tag = 'input window, operand 0, single buffered']
    #allocation4 [shape = 's32[1]{0}', space=sflag, size = 0x4, scoped, tag = 'scoped memory for tpu_custom_call.1']
    #allocation5 [shape = 's32[1]{0}', space=sflag, size = 0x4, scoped, tag = 'scoped memory for tpu_custom_call.1']
    #allocation6 [shape = 'u8[4096]{0}', space=vmem, size = 0x1000, scoped, tag = 'input window, operand 1, single buffered']
    #allocation7 [shape = 's32[1]{0}', space=sflag, size = 0x4, scoped, tag = 'scoped memory for tpu_custom_call.1']
    #allocation8 [shape = 'u8[4096]{0}', space=vmem, size = 0x1000, scoped, tag = 'output window, operand 0, single buffered']
    %7 = vsyncpa [#allocation4], 0
    %8 = vsyncpa [#allocation7], 0
    %9 = vsyncpa [#allocation5], 0
    // Predicated region
    $region2: #{tpu_custom_call.1} parent=1 // pred_check
      _
    $region3: #{tpu_custom_call.1} parent=1 // pred_check_branch
      %11 = sbr.rel (0) target = $region5
    $region4: #{tpu_custom_call.1} parent=1 // pred_region
      %s12 = sadd.s32 0, 0
      %p13 = scmp.lt.s32.totalorder %s12, 0
      %s14 = scalar_select %p13, %s12, 0
      %16 = vsyncadd [#allocation4], 0
      %s17 = smul.addr %s14, 8
      %s18 = scalar_lea.hbm %s0, %s17
      %s19 = sshll.u32 %s18, 4
      %s20 = int_to_ptr.hbm [resolvable:$true] %s19
      %s21 = sshll.u32 [#allocation3], 4
      %s22 = int_to_ptr.vmem [resolvable:$true] %s21
      %27 = dma.hbm_to_vmem [thread:$0]  %s20, 384, %s22, [#allocation4], 128, 128, 8
    $region5: #{tpu_custom_call.1} parent=1 // pred_fallthru
      _
    // Predicated region
    $region6: #{tpu_custom_call.1} parent=1 // pred_check
      _
    $region7: #{tpu_custom_call.1} parent=1 // pred_check_branch
      %29 = sbr.rel (0) target = $region9
    $region8: #{tpu_custom_call.1} parent=1 // pred_region
      %s30 = sadd.s32 0, 0
      %p31 = scmp.lt.s32.totalorder %s30, 0
      %s32 = scalar_select %p31, %s30, 0
      %34 = vsyncadd [#allocation7], 0
      %s35 = smul.addr %s32, 8
      %s36 = scalar_lea.hbm %s1, %s35
      %s38 = sshll.u32 %s36, 4
      %s39 = int_to_ptr.hbm [resolvable:$true] %s38
      %s40 = sshll.u32 [#allocation6], 4
      %s41 = int_to_ptr.vmem [resolvable:$true] %s40
      %43 = dma.hbm_to_vmem [thread:$0]  %s39, 128, %s41, [#allocation7]
    $region9: #{tpu_custom_call.1} parent=1 // pred_fallthru
      _
    // Predicated region
    $region10: #{tpu_custom_call.1} parent=1 // pred_check
      _
    $region11: #{tpu_custom_call.1} parent=1 // pred_check_branch
      %45 = sbr.rel (0) target = $region13
    $region12: #{tpu_custom_call.1} parent=1 // pred_region
      %47 = dma.done [#allocation4], 384
    $region13: #{tpu_custom_call.1} parent=1 // pred_fallthru
      _
    // Predicated region
    $region14: #{tpu_custom_call.1} parent=1 // pred_check
      _
    $region15: #{tpu_custom_call.1} parent=1 // pred_check_branch
      %49 = sbr.rel (0) target = $region17
    $region16: #{tpu_custom_call.1} parent=1 // pred_region
      %51 = dma.done [#allocation7], 128
    $region17: #{tpu_custom_call.1} parent=1 // pred_fallthru
      _
    %s52 = sadd.s32 0, 0
    %p53 = scmp.lt.s32.totalorder %s52, 0
    %s54 = scalar_select %p53, %s52, 0
    %s55 = sadd.s32 0, 0
    %p56 = scmp.lt.s32.totalorder %s55, 0
    %s57 = scalar_select %p56, %s55, 0
    %p58 = scmp.eq.s32.totalorder 0, 0
    // Predicated region
    $region18: #{tpu_custom_call.1} parent=1 // pred_check
      %p59 = pneg %p58
    $region19: #{tpu_custom_call.1} parent=1 // pred_check_branch
      %61 = sbr.rel (%p59) target = $region21
    $region20: #{tpu_custom_call.1} parent=1 // pred_region
      %62 = vst [vmem:[#allocation2] sm:$0xff] 0.0
    $region21: #{tpu_custom_call.1} parent=1 // pred_fallthru
      _
    %v63 = vld [vmem:[#allocation6] sm:$0xff]
    %v64 = vld [vmem:[#allocation3] sm:$0xff]
    %s65 = scalar_lea.vmem [#allocation3], 8
    %v66 = vld [vmem:[%s65] sm:$0xff]
    %s67 = scalar_lea.vmem [#allocation3], 16
    %v68 = vld [vmem:[%s67] sm:$0xff]
    %v69 = vmax.f32 %v64, %v66
    %v70 = vmax.f32 %v69, %v68
    %v71 = vsub.f32 %v64, %v70
    %v72 = vmul.f32 %v71, 1.442695
    %v73 = vpow.pop %v72
    %v74 = vadd.f32 %v73, 0.0
    %vm75 = vcmp.eq.s32.totalorder %v63, 0
    %v76 = vsel %vm75, %v64, 0.0
    %v77 = vsel %vm75, 100.0, 0.0
    %v78 = vsub.f32 %v66, %v70
    %v79 = vmul.f32 %v78, 1.442695
    %v80 = vpow.pop %v79
    %v81 = vadd.f32 %v74, %v80
    %vm82 = vcmp.eq.s32.totalorder %v63, 1
    %v83 = vsel %vm82, %v66, %v76
    %v84 = vsel %vm82, 1.0, %v77
    %v85 = vsub.f32 %v68, %v70
    %v86 = vmul.f32 %v85, 1.442695
    %v87 = vpow.pop %v86
    %v88 = vadd.f32 %v81, %v87
    %vm89 = vcmp.eq.s32.totalorder %v63, 2
    %v90 = vsel %vm89, %v68, %v83
    %v91 = vsel %vm89, 100.0, %v84
    %v92 = vlog2.pop %v88
    %v93 = vmul.f32 %v92, 0.6931472
    %v94 = vadd.f32 %v70, %v93
    %v95 = vsub.f32 %v94, %v90
    %v96 = vmul.f32 %v91, %v95
    %v97 = vsub.f32 0.0, %v96
    %v98 = vmul.f32 %v97, 1.442695
    %v99 = vpow.pop %v98
    %v100 = vsub.f32 1.0, %v99
    %v101 = vmax.f32 %v100, 0.0
    %v102 = vmul.f32 %v101, %v101
    %v103 = vmul.f32 %v102, 0.25
    %v104 = vmul.f32 %v103, %v96
    %s105 = sadd.s32 0, 0
    %s106 = smul.u32 %s105, 8
    %v107 = vlaneseq
    %v108 = vshrl.u32 %v107, 7
    %v109 = vlaneseq
    %v110 = vand.u32 %v109, 127
    %v111 = vstv %s106
    %v112 = vadd.s32 %v111, %v108
    %v113 = vmul.u32 %v112, 128
    %v114 = vadd.s32 %v113, %v110
    %vm115 = vcmp.lt.s32.totalorder %v114, 8
    %v116 = vsel %vm115, %v104, 0.0
    %v117 = vld [vmem:[#allocation2] sm:$0xff]
    %v118 = vadd.f32 %v117, %v116
    %119 = vst [vmem:[#allocation2] sm:$0xff] %v118
    // Predicated region
    $region22: #{tpu_custom_call.1} parent=1 // pred_check
      %p120 = pneg %p58
    $region23: #{tpu_custom_call.1} parent=1 // pred_check_branch
      %122 = sbr.rel (%p120) target = $region25
    $region24: #{tpu_custom_call.1} parent=1 // pred_region
      %v123 = vld [vmem:[#allocation2] sm:$0xff]
      %124 = vadd.xlane.f32.xlu0 %v123
      %v125 = vpop.xlane.xlu0 %124
      %v126 = vrot.slane %v125, 4
      %v127 = vadd.f32 %v125, %v126
      %v128 = vrot.slane %v127, 2
      %v129 = vadd.f32 %v127, %v128
      %v130 = vrot.slane %v129, 1
      %v131 = vadd.f32 %v129, %v130
      %s132 = vtos %v131
      %v133 = vstv %s132
      %134 = vst [vmem:[#allocation8] sm:$0xff] %v133
    $region25: #{tpu_custom_call.1} parent=1 // pred_fallthru
      _
    // Predicated region
    $region26: #{tpu_custom_call.1} parent=1 // pred_check
      _
    $region27: #{tpu_custom_call.1} parent=1 // pred_check_branch
      %136 = sbr.rel (0) target = $region29
    $region28: #{tpu_custom_call.1} parent=1 // pred_region
      %138 = vsyncadd [#allocation5], 0
      %s140 = sshll.u32 [#allocation8], 4
      %s141 = int_to_ptr.vmem [resolvable:$true] %s140
      %s142 = sshll.u32 %s2, 4
      %s143 = int_to_ptr.hbm [resolvable:$true] %s142
      %145 = dma.vmem_to_hbm [thread:$0]  %s141, 128, %s143, [#allocation5]
    $region29: #{tpu_custom_call.1} parent=1 // pred_fallthru
      _
    // Predicated region
    $region30: #{tpu_custom_call.1} parent=1 // pred_check
      _
    $region31: #{tpu_custom_call.1} parent=1 // pred_check_branch
      %147 = sbr.rel (0) target = $region33
    $region32: #{tpu_custom_call.1} parent=1 // pred_region
      %149 = dma.done [#allocation5], 128
    $region33: #{tpu_custom_call.1} parent=1 // pred_fallthru
      _
    %150 = vsyncpa [#allocation4], 1
    %151 = vsyncpa [#allocation7], 1
    %152 = vsyncpa [#allocation5], 1

</llo_original>
